<compile_context>
chip_gen: v7x
topology: tpu7x:2x2x1
jax: 0.10.0
libtpu: 0.0.40
codegen_flags: <defaults>
</compile_context>

<pallas_src>
import math

import numpy as np

import jax
import jax.numpy as jnp
from jax.experimental import pallas as pl
from jax.experimental.pallas import tpu as pltpu


def _round_up(x, m):
    return ((x + m - 1) // m) * m


def _cdiv(a, b):
    return (a + b - 1) // b


def _num_tensorcores():
    """TensorCores per chip (2 on v7x, 1 on v5e/v6e).  Safe fallback = 1."""
    try:
        info = pltpu.get_tpu_info()
        for attr in ("num_cores", "core_count", "num_tensorcores"):
            n = getattr(info, attr, None)
            if isinstance(n, int) and n > 0:
                return n
    except Exception:
        pass
    try:
        n = getattr(jax.devices()[0], "num_cores", None)
        if isinstance(n, int) and n > 0:
            return n
    except Exception:
        pass
    return 1


# ---------------------------------------------------------------------------
# Parameter setup (deterministic, mirrors generate_cell_anchors in __init__)
# ---------------------------------------------------------------------------
def generate_cell_anchors(sizes, aspect_ratios):
    anchors = []
    for size in sizes:
        area = float(size) ** 2.0
        for ar in aspect_ratios:
            w = math.sqrt(area / ar)
            h = ar * w
            anchors.append((-w / 2.0, -h / 2.0, w / 2.0, h / 2.0))
    return tuple(anchors)  # (A, 4) python floats (XYXY cell anchors)


# ---------------------------------------------------------------------------
# Pallas kernel (per feature level), output layout (H, W*A*4):
#   out[h, w*A4 + a*4 + c] = cell[a, c] + shift_c(h, w)
#   shift_0 = shift_2 = (offset + w) * stride   (x coords, lane-dependent)
#   shift_1 = shift_3 = (offset + h) * stride   (y coords, sublane-dependent)
# The lane-dependent part + cell offsets live in cm_ref row 0 (cx); row 1 is
# the 0/1 mask selecting the y coordinates (my).  Per output vreg the kernel
# does exactly one multiply + one add + one store.
# ---------------------------------------------------------------------------
def _make_anchor_kernel(th, stride, offset):
    stride_f = float(stride)
    offset_f = float(offset)

    def kernel(cm_ref, out_ref):
        h0 = pl.program_id(0) * th
        h_idx = jax.lax.broadcasted_iota(jnp.int32, (th, 1), 0) + h0
        sy = (offset_f + h_idx.astype(jnp.float32)) * stride_f   # (th, 1)
        cx = cm_ref[0:1, :]                                       # (1, WL)
        my = cm_ref[1:2, :]                                       # (1, WL)
        out_ref[...] = cx + my * sy                               # (th, WL)

    return kernel


# 4 MiB blocks: double-buffered output (8 MiB) + iota/shift intermediates is
# well under the 32 MiB scoped-VMEM default on all of v5e / v6e / v7x while
# keeping per-step overhead (~0.35 us) negligible.
_TARGET_BLOCK_BYTES = 4 * 1024 * 1024


def grid_anchors_pallas(grid_size, stride, offset, cell_anchors,
                        target_block_bytes=_TARGET_BLOCK_BYTES):
    """Anchors for one feature level.  Returns (H*W*A, 4) float32 XYXY."""
    H, W = int(grid_size[0]), int(grid_size[1])
    A = len(cell_anchors)
    A4 = A * 4
    WL = W * A4                       # dense lane axis: (w, a, coord) packed

    # ---- per-lane constants (host-side, tiny) ------------------------------
    ca = np.asarray(cell_anchors, dtype=np.float32).reshape(A, 4)
    sx = (float(offset) + np.arange(W, dtype=np.float32)) * float(stride)
    is_y = np.array([0.0, 1.0, 0.0, 1.0], dtype=np.float32)
    cx = ca[None, :, :] + sx[:, None, None] * (1.0 - is_y)[None, None, :]
    my = np.broadcast_to(is_y, (W, A, 4))
    cm = np.zeros((8, WL), dtype=np.float32)      # pad sublanes to 8
    cm[0] = cx.reshape(-1)
    cm[1] = my.reshape(-1)

    # ---- tiling: pick the step count first, then the tile -------------------
    row_bytes = WL * 4
    total_bytes = H * row_bytes
    nsteps = max(1, _cdiv(total_bytes, target_block_bytes))
    ncores = _num_tensorcores()
    if ncores > 1 and H >= 8 * ncores and total_bytes >= (1 << 20):
        # balanced split across TensorCores (v7x megacore); single-core chips
        # (v5e/v6e) never get a forced split -> fewer, larger blocks.
        nsteps = _round_up(max(nsteps, ncores), ncores)
    if nsteps == 1:
        th, Hp = H, H                 # block == full array: zero padded rows
    else:
        th = _round_up(_cdiv(H, nsteps), 8)
        Hp = _round_up(H, th)
    nsteps = Hp // th

    kernel = _make_anchor_kernel(th, stride, offset)
    out = pl.pallas_call(
        kernel,
        out_shape=jax.ShapeDtypeStruct((Hp, WL), jnp.float32),
        grid_spec=pltpu.PrefetchScalarGridSpec(
            num_scalar_prefetch=0,
            grid=(nsteps,),
            in_specs=[pl.BlockSpec((8, WL), lambda i: (0, 0))],
            out_specs=pl.BlockSpec((th, WL), lambda i: (i, 0)),
        ),
        compiler_params=pltpu.CompilerParams(
            dimension_semantics=("parallel",)),
    )(jnp.asarray(cm))

    # Row-major (H, W*A*4) reshapes directly into the PyTorch (H*W*A, 4)
    # layout: no transpose / relayout HBM pass.  Trim padded H rows if any.
    if Hp != H:
        out = out[:H]
    return out.reshape(-1, 4)


# ---------------------------------------------------------------------------
# Module-equivalent forward
# ---------------------------------------------------------------------------
class DefaultAnchorGeneratorPallas:
    def __init__(self, sizes, aspect_ratios, strides, offset=0.0):
        self.strides = list(strides)
        self.offset = float(offset)
        assert 0.0 <= self.offset < 1.0
        self.num_features = len(self.strides)
        if len(sizes) == 1:
            sizes = sizes * self.num_features
        if len(aspect_ratios) == 1:
            aspect_ratios = aspect_ratios * self.num_features
        assert self.num_features == len(sizes) == len(aspect_ratios)
        self.cell_anchors = [
            generate_cell_anchors(s, a) for s, a in zip(sizes, aspect_ratios)
        ]
        self._anchor_cache = {}  # (level, H, W) -> (H*W*A, 4) array

    @property
    def box_dim(self):
        return 4

    @property
    def num_cell_anchors(self):
        return [len(ca) for ca in self.cell_anchors]

    def grid_anchors(self, grid_sizes):
        out = []
        for lvl, (gs, st, ca) in enumerate(
                zip(grid_sizes, self.strides, self.cell_anchors)):
            key = (lvl, int(gs[0]), int(gs[1]))
            if key not in self._anchor_cache:
                self._anchor_cache[key] = grid_anchors_pallas(
                    gs, st, self.offset, ca)
            out.append(self._anchor_cache[key])
        return out

    def forward(self, features):
        num_images = features[0].shape[0]
        grid_sizes = [f.shape[-2:] for f in features]
        anchors_over_all_feature_maps = self.grid_anchors(grid_sizes)
        # list of #images elements, each a list of per-level anchor boxes
        # (anchors are image-independent, like the PyTorch deepcopy loop;
        #  returned as plain arrays instead of Boxes wrappers)
        return [list(anchors_over_all_feature_maps) for _ in range(num_images)]


# ---------------------------------------------------------------------------
# Pure-JAX reference for verification
# ---------------------------------------------------------------------------
def grid_anchors_ref(grid_size, stride, offset, cell_anchors):
    H, W = int(grid_size[0]), int(grid_size[1])
    ca = jnp.asarray(cell_anchors, dtype=jnp.float32)
    sx = (offset + jnp.arange(W, dtype=jnp.float32)) * stride
    sy = (offset + jnp.arange(H, dtype=jnp.float32)) * stride
    yy, xx = jnp.meshgrid(sy, sx, indexing="ij")
    sxf, syf = xx.reshape(-1), yy.reshape(-1)
    shifts = jnp.stack([sxf, syf, sxf, syf], axis=1)
    return (shifts[:, None, :] + ca[None, :, :]).reshape(-1, 4)


if __name__ == "__main__":
    key = jax.random.PRNGKey(0)
    k1, k2 = jax.random.split(key)

    # Two feature levels, NCHW, small shapes (only spatial shape matters)
    features = [
        jax.random.normal(k1, (2, 4, 16, 16), dtype=jnp.float32),
        jax.random.normal(k2, (2, 4, 8, 8), dtype=jnp.float32),
    ]

    gen = DefaultAnchorGeneratorPallas(
        sizes=[[32.0, 64.0]],                 # same sizes for all levels
        aspect_ratios=[[0.5, 1.0, 2.0]],      # same ratios for all levels
        strides=[8, 16],
        offset=0.5,
    )

    anchors = gen.forward(features)
    anchors = jax.block_until_ready(anchors)

    # correctness check against pure-JAX reference
    grid_sizes = [f.shape[-2:] for f in features]
    for lvl, (gs, st, ca) in enumerate(
            zip(grid_sizes, gen.strides, gen.cell_anchors)):
        ref = grid_anchors_ref(gs, st, gen.offset, ca)
        got = anchors[0][lvl]
        assert got.shape == ref.shape, (got.shape, ref.shape)
        assert got.dtype == jnp.float32
        assert jnp.allclose(got, ref, atol=1e-4), f"mismatch at level {lvl}"

    # each image gets identical per-level anchors
    assert len(anchors) == features[0].shape[0]
    assert all(len(per_img) == len(features) for per_img in anchors)

    # second forward hits the cache (no recompute)
    anchors2 = gen.forward(features)
    assert anchors2[0][0] is anchors[0][0]

    # explicitly exercise the multi-step grid and the padded-H trim paths
    ca0 = gen.cell_anchors[0]
    for gs in [(16, 16), (20, 16)]:
        got = grid_anchors_pallas(gs, 8, gen.offset, ca0,
                                  target_block_bytes=4096)
        got = jax.block_until_ready(got)
        ref = grid_anchors_ref(gs, 8, gen.offset, ca0)
        assert got.shape == ref.shape, (got.shape, ref.shape)
        assert jnp.allclose(got, ref, atol=1e-4), f"mismatch at grid {gs}"

    print("KERNEL_OK")
</pallas_src>

<mosaic_0001>
module attributes {stable_mosaic.version = 11 : i64} {
  func.func @kernel(%arg0: i32, %arg1: memref<8x384xf32, #tpu.memory_space<vmem>>, %arg2: memref<16x384xf32, #tpu.memory_space<vmem>>) attributes {dimension_semantics = [#tpu.dimension_semantics<parallel>], iteration_bounds = array<i64: 1>, scalar_prefetch = 0 : i64, scratch_operands = 0 : i64, tpu.core_type = #tpu.core_type<tc>, window_params = [{pipeline_mode = #tpu.pipeline_mode<synchronous>, transform_indices = @transform_0, window_bounds = array<i64: 8, 384>}, {transform_indices = @transform_1, window_bounds = array<i64: 16, 384>}]} {
    %c16_i32 = arith.constant 16 : i32
    %0 = arith.muli %arg0, %c16_i32 : i32
    %1 = tpu.iota {dimensions = array<i32: 0>} : vector<16x1xi32>
    %2 = vector.broadcast %0 : i32 to vector<16x1xi32>
    %3 = arith.addi %1, %2 : vector<16x1xi32>
    %4 = arith.sitofp %3 : vector<16x1xi32> to vector<16x1xf32>
    %cst = arith.constant 5.000000e-01 : f32
    %5 = vector.broadcast %cst : f32 to vector<16x1xf32>
    %6 = arith.addf %5, %4 : vector<16x1xf32>
    %cst_0 = arith.constant 8.000000e+00 : f32
    %7 = vector.broadcast %cst_0 : f32 to vector<16x1xf32>
    %8 = arith.mulf %6, %7 : vector<16x1xf32>
    %c0 = arith.constant 0 : index
    %c0_1 = arith.constant 0 : index
    %9 = vector.load %arg1[%c0, %c0_1] : memref<8x384xf32, #tpu.memory_space<vmem>>, vector<1x384xf32>
    %c1 = arith.constant 1 : index
    %c0_2 = arith.constant 0 : index
    %10 = vector.load %arg1[%c1, %c0_2] : memref<8x384xf32, #tpu.memory_space<vmem>>, vector<1x384xf32>
    %11 = vector.broadcast %10 : vector<1x384xf32> to vector<16x384xf32>
    %12 = vector.broadcast %8 : vector<16x1xf32> to vector<16x384xf32>
    %13 = arith.mulf %11, %12 : vector<16x384xf32>
    %14 = vector.broadcast %9 : vector<1x384xf32> to vector<16x384xf32>
    %15 = arith.addf %14, %13 : vector<16x384xf32>
    %c0_3 = arith.constant 0 : index
    %c0_4 = arith.constant 0 : index
    %16 = vector.load %arg2[%c0_3, %c0_4] : memref<16x384xf32, #tpu.memory_space<vmem>>, vector<16x384xf32>
    tpu.vector_store %arg2[%c0_3, %c0_4], %15 {strides = array<i32>} : memref<16x384xf32, #tpu.memory_space<vmem>>, vector<16x384xf32>,
    return
  }
  func.func @transform_0(%arg0: i32) -> (i32, i32) {
    %c0_i32 = arith.constant 0 : i32
    %c0_i32_0 = arith.constant 0 : i32
    %c0_i32_1 = arith.constant 0 : i32
    return %c0_i32, %c0_i32_0 : i32, i32
  }
  func.func @transform_1(%arg0: i32) -> (i32, i32) {
    %c0_i32 = arith.constant 0 : i32
    %c0_i32_0 = arith.constant 0 : i32
    return %arg0, %c0_i32 : i32, i32
  }
}

</mosaic_0001>

<llo_original>
// kernel: tpu_custom_call.1
$region0: #{tpu_custom_call.1}
  #allocation0 [shape = 'u32[]', space=smem, size = 0x4, offset = 0x4, fixed_abs, tag = 'smem constant byte address 0x4 - core index']
  #allocation1 [shape = 'u32[144,128]{1,0:T(1,128)}', space=vmem, size = 0x12000, scoped, tag = 'internal scratch']
  %s0 = inlined_call_operand.hbm [shape: f32[8,384], index: 0, kind: input, shape index: {}]
  %s1 = inlined_call_operand.hbm [shape: f32[16,384], index: 1, kind: output, shape index: {}]
  %s2 = sld [smem:[#allocation0]]
  $region18: #{tpu_custom_call.1} parent=0
    _
  %s4 = ssub.s32 1, %s2
  %s5 = scalar_select 0, %s4, %s2
  $region1: #{tpu_custom_call.1} parent=0
    #allocation2 [shape = 'u8[12288]{0}', space=vmem, size = 0x3000, scoped, tag = 'input window, operand 0, single buffered']
    #allocation3 [shape = 's32[1]{0}', space=sflag, size = 0x4, scoped, tag = 'scoped memory for tpu_custom_call.1']
    #allocation4 [shape = 's32[1]{0}', space=sflag, size = 0x4, scoped, tag = 'scoped memory for tpu_custom_call.1']
    #allocation5 [shape = 'u8[24576]{0}', space=vmem, size = 0x6000, scoped, tag = 'output window, operand 0, single buffered']
    %6 = vsyncpa [#allocation3], 0
    %7 = vsyncpa [#allocation4], 0
    // Predicated region
    $region2: #{tpu_custom_call.1} parent=1 // pred_check
      _
    $region3: #{tpu_custom_call.1} parent=1 // pred_check_branch
      %9 = sbr.rel (0) target = $region5
    $region4: #{tpu_custom_call.1} parent=1 // pred_region
      %s11 = ssub.s32 384, 384
      %12 = vsyncadd [#allocation3], %s11
      %s14 = sshll.u32 [#allocation2], 4
      %s15 = int_to_ptr.vmem [resolvable:$true] %s14
      %17 = dma.hbm_to_vmem [thread:$0]  %s0, 384, %s15, [#allocation3]
    $region5: #{tpu_custom_call.1} parent=1 // pred_fallthru
      _
    // Predicated region
    $region6: #{tpu_custom_call.1} parent=1 // pred_check
      _
    $region7: #{tpu_custom_call.1} parent=1 // pred_check_branch
      %19 = sbr.rel (0) target = $region9
    $region8: #{tpu_custom_call.1} parent=1 // pred_region
      %20 = dma.done [#allocation3], 384
    $region9: #{tpu_custom_call.1} parent=1 // pred_fallthru
      _
    %s21 = smul.u32 0, 16
    %v22 = vlaneseq
    %v23 = vshrl.u32 %v22, 7
    %v24 = vadd.s32 %v23, 8
    %v25 = vstv %s21
    %v26 = vadd.s32 %v23, %v25
    %v27 = vadd.s32 %v24, %v25
    %v28 = vcvt.s32.f32 %v26
    %v29 = vcvt.s32.f32 %v27
    %v30 = vadd.f32 %v28, 0.5
    %v31 = vadd.f32 %v29, 0.5
    %v32 = vmul.f32 %v30, 8.0
    %v33 = vmul.f32 %v31, 8.0
    %v34 = vld [vmem:[#allocation2] ss:$8 sm:$0x7]
    %s35 = scalar_lea.vmem [#allocation2], 1
    %v36 = vld [vmem:[%s35] ss:$8 sm:$0x7]
    %v38 = vlaneseq
    %v39 = vshrl.u32 %v38, 7
    %v40 = vsub.s32 0, %v39
    %v41 = vrot.slane %v36, %v40
    %v42 = vlaneseq
    %v43 = vshrl.u32 %v42, 7
    %v44 = vsub.s32 1, %v43
    %v45 = vrot.slane %v36, %v44
    %v46 = vlaneseq
    %v47 = vshrl.u32 %v46, 7
    %v48 = vsub.s32 2, %v47
    %v49 = vrot.slane %v36, %v48
    %v53 = vmul.f32 %v41, %v32
    %v54 = vmul.f32 %v45, %v32
    %v55 = vmul.f32 %v49, %v32
    %v56 = vmul.f32 %v41, %v33
    %v57 = vmul.f32 %v45, %v33
    %v58 = vmul.f32 %v49, %v33
    %v60 = vlaneseq
    %v61 = vshrl.u32 %v60, 7
    %v62 = vsub.s32 0, %v61
    %v63 = vrot.slane %v34, %v62
    %v64 = vlaneseq
    %v65 = vshrl.u32 %v64, 7
    %v66 = vsub.s32 1, %v65
    %v67 = vrot.slane %v34, %v66
    %v68 = vlaneseq
    %v69 = vshrl.u32 %v68, 7
    %v70 = vsub.s32 2, %v69
    %v71 = vrot.slane %v34, %v70
    %v75 = vadd.f32 %v63, %v53
    %v76 = vadd.f32 %v67, %v54
    %v77 = vadd.f32 %v71, %v55
    %v78 = vadd.f32 %v63, %v56
    %v79 = vadd.f32 %v67, %v57
    %v80 = vadd.f32 %v71, %v58
    %81 = vst [vmem:[#allocation5] sm:$0xff] %v75
    %82 = vst [vmem:[#allocation5 + $0x8] sm:$0xff] %v76
    %83 = vst [vmem:[#allocation5 + $0x10] sm:$0xff] %v77
    %84 = vst [vmem:[#allocation5 + $0x18] sm:$0xff] %v78
    %85 = vst [vmem:[#allocation5 + $0x20] sm:$0xff] %v79
    %86 = vst [vmem:[#allocation5 + $0x28] sm:$0xff] %v80
    // Predicated region
    $region10: #{tpu_custom_call.1} parent=1 // pred_check
      _
    $region11: #{tpu_custom_call.1} parent=1 // pred_check_branch
      %88 = sbr.rel (0) target = $region13
    $region12: #{tpu_custom_call.1} parent=1 // pred_region
      %s90 = ssub.s32 768, 768
      %91 = vsyncadd [#allocation4], %s90
      %s92 = sshll.u32 [#allocation5], 4
      %s93 = int_to_ptr.vmem [resolvable:$true] %s92
      %98 = dma.vmem_to_hbm [thread:$0]  %s93, 768, %s1, [#allocation4], 384, 384, 24
    $region13: #{tpu_custom_call.1} parent=1 // pred_fallthru
      _
    // Predicated region
    $region14: #{tpu_custom_call.1} parent=1 // pred_check
      _
    $region15: #{tpu_custom_call.1} parent=1 // pred_check_branch
      %100 = sbr.rel (0) target = $region17
    $region16: #{tpu_custom_call.1} parent=1 // pred_region
      %101 = dma.done [#allocation4], 768
    $region17: #{tpu_custom_call.1} parent=1 // pred_fallthru
      _
    %102 = vsyncpa [#allocation3], 1
    %103 = vsyncpa [#allocation4], 1

</llo_original>
